<compile_context>
chip_gen: v6e
topology: v6e:2x2x1
jax: 0.10.0
libtpu: 0.0.40
codegen_flags: <defaults>
</compile_context>

<pallas_src>
import jax
import jax.numpy as jnp
from jax.experimental import pallas as pl
from jax.experimental.pallas import tpu as pltpu

FILTER_LEN = 101             # SpeechBrain DropFreq filter_length
PAD = FILTER_LEN // 2        # 50
SUB = 256                    # sub-block length (lane dim of the band matmuls)
HALO = 128                   # inter-chunk halo, lane-aligned, >= PAD
ROWS_PER_STEP = 8            # sub-rows per grid step -> matmul M = 8 * batch


def _round_up(n, m):
    return (n + m - 1) // m * m


# ----------------------------------------------------------------------------
# Filter construction (pure JAX; mirrors speechbrain notch_filter / DropFreq)
# ----------------------------------------------------------------------------
def _blackman(n):
    # torch.blackman_window default (periodic=True): denominator = n
    i = jnp.arange(n, dtype=jnp.float32)
    return (0.42
            - 0.5 * jnp.cos(2.0 * jnp.pi * i / n)
            + 0.08 * jnp.cos(4.0 * jnp.pi * i / n))


def _sinc(x):
    safe = jnp.where(x == 0.0, 1.0, x)
    return jnp.where(x == 0.0, 1.0, jnp.sin(safe) / safe)


def _notch_filter(notch_freq, filter_width, notch_width):
    pad = filter_width // 2
    inputs = jnp.arange(filter_width, dtype=jnp.float32) - pad
    notch_freq = notch_freq + notch_width
    window = _blackman(filter_width)
    hlpf = _sinc(3.0 * (notch_freq - notch_width) * inputs) * window
    hlpf = hlpf / jnp.sum(hlpf)
    hhpf = _sinc(3.0 * (notch_freq + notch_width) * inputs) * window
    hhpf = hhpf / (-jnp.sum(hhpf))
    hhpf = hhpf.at[pad].add(1.0)
    return hlpf + hhpf


def _corr_same(a, w):
    # 'same'-mode cross-correlation == F.conv1d(a, w, padding=len(w)//2)
    return jnp.convolve(a, w[::-1], mode="same")


def _build_drop_filter(key, drop_prob, f_low, f_high, c_low, c_high, width):
    """Compose the 101-tap drop filter (identity delta if no drop this call)."""
    k_prob, k_count, k_freq = jax.random.split(key, 3)
    delta = jnp.zeros(FILTER_LEN, jnp.float32).at[PAD].set(1.0)
    do_drop = jax.random.uniform(k_prob) <= drop_prob          # torch: rand > p -> skip
    count = jax.random.randint(k_count, (), c_low, c_high + 1)  # {1, 2} by default
    freqs = jax.random.uniform(k_freq, (c_high,)) * (f_high - f_low) + f_low
    filt = delta
    for i in range(c_high):  # static max count; unused notches gated to identity
        notch = _notch_filter(freqs[i], FILTER_LEN, width)
        notch = jnp.where(i < count, notch, delta)
        filt = _corr_same(filt, notch)
    return jnp.where(do_drop, filt, delta)


def _band_matrices(filt, sub):
    """Block-banded matrices: out_sub = prev_sub @ Wm + cur_sub @ W0 + next_sub @ Wp.

    W[p, i] = filt[k] where input sample (sub-block offset `off`, position p)
    feeds output position i via tap k = off + p - i + PAD.
    """
    p = jnp.arange(sub, dtype=jnp.int32)[:, None]   # input sample within its sub-block
    i = jnp.arange(sub, dtype=jnp.int32)[None, :]   # output sample within the sub-block

    def band(off):
        k = p + off - i + PAD
        valid = (k >= 0) & (k < FILTER_LEN)
        return jnp.where(valid, filt[jnp.clip(k, 0, FILTER_LEN - 1)], 0.0)

    return jnp.stack([band(-sub), band(0), band(sub)]).astype(jnp.float32)


# ----------------------------------------------------------------------------
# Pallas kernel: block-banded FIR via three MXU matmuls per chunk
# ----------------------------------------------------------------------------
def _fir_band_kernel(w_ref, xm_ref, xl_ref, xr_ref, o_ref):
    # w_ref : (3, SUB, SUB) f32 — [Wm, W0, Wp], VMEM-resident (constant index map)
    # xm_ref: (B, R, SUB)       — current chunk, R sub-rows of SUB samples
    # xl_ref: (B, HALO)         — last HALO samples of the previous chunk
    # xr_ref: (B, HALO)         — first HALO samples of the next chunk
    # o_ref : (B, R, SUB)       — lane-dense output block
    j = pl.program_id(0)
    last = pl.num_programs(0) - 1
    bsz, rr, sub = xm_ref.shape
    halo = xl_ref.shape[-1]

    main = xm_ref[...].astype(jnp.float32)
    # Zeroing the halos at the signal edges *is* the 'same' zero padding.
    left = xl_ref[...].astype(jnp.float32) * (j > 0).astype(jnp.float32)
    right = xr_ref[...].astype(jnp.float32) * (j < last).astype(jnp.float32)

    # Sub-row r of `prev`/`nxt` is sub-row r-1 / r+1 of the signal.  Only the
    # first / last sub-row reaches outside the chunk, and Wm / Wp only read the
    # HALO samples nearest the boundary, so the rest of those rows can be zero.
    zpad = jnp.zeros((bsz, 1, sub - halo), jnp.float32)
    prev0 = jnp.concatenate([zpad, left[:, None, :]], axis=-1)    # (B, 1, SUB)
    nextr = jnp.concatenate([right[:, None, :], zpad], axis=-1)   # (B, 1, SUB)
    if rr > 1:
        prev = jnp.concatenate([prev0, main[:, :rr - 1, :]], axis=1)
        nxt = jnp.concatenate([main[:, 1:, :], nextr], axis=1)
    else:
        prev, nxt = prev0, nextr

    # Pack (batch, sub-row) into the MXU M dimension: M = B * R.
    m2 = main.reshape(bsz * rr, sub)
    p2 = prev.reshape(bsz * rr, sub)
    n2 = nxt.reshape(bsz * rr, sub)

    acc = jnp.dot(p2, w_ref[0], preferred_element_type=jnp.float32)
    acc += jnp.dot(m2, w_ref[1], preferred_element_type=jnp.float32)
    acc += jnp.dot(n2, w_ref[2], preferred_element_type=jnp.float32)
    o_ref[...] = acc.reshape(bsz, rr, sub).astype(o_ref.dtype)


def freq_dropper(x, key, *, drop_prob=1.0, drop_freq_low=1e-14, drop_freq_high=1.0,
                 drop_count_low=1, drop_count_high=2, drop_width=0.05,
                 sub=SUB, rows_per_step=ROWS_PER_STEP):
    """Pallas equivalent of FreqDropper(p=drop_prob).forward(x), x: [batch, time]."""
    # `.cuda()` in the reference is device placement only — a no-op here.
    assert x.ndim == 2, "expected [batch, time] waveforms"
    # TODO(synk): [batch, time, channels] inputs are not handled (2-D case only).
    b, t = x.shape
    filt = _build_drop_filter(key, drop_prob, drop_freq_low, drop_freq_high,
                              drop_count_low, drop_count_high, drop_width)
    wband = _band_matrices(filt, sub)                      # (3, sub, sub) f32

    # Sub-rows per grid step: 8 when the signal is long enough for >= 2 grid
    # steps (megacore on v7x); otherwise one full-signal chunk (block dim then
    # equals the full array dim, keeping the (8,128) block rule satisfied).
    n_sub0 = pl.cdiv(t, sub)
    r = rows_per_step if n_sub0 >= 2 * rows_per_step else n_sub0
    chunk = r * sub
    t_grid = _round_up(t, chunk)
    n_chunks = t_grid // chunk
    n_sub = t_grid // sub
    lanes_per_chunk = chunk // HALO
    n_halo_blocks = t_grid // HALO

    # Right-edge zero pad to a chunk multiple (also supplies the right 'same'
    # padding zeros); a no-op when time is already aligned (as in __main__).
    x_pad = x if t_grid == t else jnp.pad(x, ((0, 0), (0, t_grid - t)))
    xv = x_pad.reshape(b, n_sub, sub)                      # free row-major view

    out3 = pl.pallas_call(
        _fir_band_kernel,
        out_shape=jax.ShapeDtypeStruct((b, n_sub, sub), x.dtype),
        grid=(n_chunks,),
        in_specs=[
            # Band matrices: constant block index -> fetched once, VMEM-resident.
            pl.BlockSpec((3, sub, sub), lambda j: (0, 0, 0)),
            # Current chunk: (B, R, SUB), time-blocked (no whole-signal slab).
            pl.BlockSpec((b, r, sub), lambda j: (0, j, 0)),
            # Left / right halos: (B, 128) blocks on the 2-D view, clamped at
            # the edges (zero-gated in-kernel for the first / last chunk).
            pl.BlockSpec((b, HALO),
                         lambda j: (0, jnp.maximum(j * lanes_per_chunk - 1, 0))),
            pl.BlockSpec((b, HALO),
                         lambda j: (0, jnp.minimum((j + 1) * lanes_per_chunk,
                                                   n_halo_blocks - 1))),
        ],
        out_specs=pl.BlockSpec((b, r, sub), lambda j: (0, j, 0)),
        compiler_params=pltpu.CompilerParams(
            dimension_semantics=("parallel",)),
    )(wband, xv, x_pad, x_pad)
    return out3.reshape(b, t_grid)[:, :t]


# ----------------------------------------------------------------------------
# Reference + smoke test
# ----------------------------------------------------------------------------
def _ref_same_conv(x, w):
    """Exact-f32 reference: 'same' cross-correlation == F.conv1d(x, w, padding=50)."""
    _, t = x.shape
    xp = jnp.pad(x, ((0, 0), (PAD, PAD)))
    out = jnp.zeros_like(x)
    for k in range(FILTER_LEN):
        out = out + w[k] * xp[:, k:k + t]
    return out


if __name__ == "__main__":
    root = jax.random.PRNGKey(0)
    k_x, k_aug = jax.random.split(root)

    # Small waveform batch consistent with the module: [batch=2, time=4096]
    # (>= 2 grid steps so the parallel axis can split across v7x TensorCores).
    x = jax.random.normal(k_x, (2, 4096), dtype=jnp.float32)

    y = freq_dropper(x, k_aug, drop_prob=1.0)
    y = jax.block_until_ready(y)

    assert y.shape == x.shape and y.dtype == x.dtype

    # Same filter (same key), exact-f32 shifted-sum reference.  Tolerance is
    # sized for a worst-case bf16 MXU pass; Mosaic's f32 matmul (multi-pass,
    # f32 accumulate) lands orders of magnitude inside it.
    filt = _build_drop_filter(k_aug, 1.0, 1e-14, 1.0, 1, 2, 0.05)
    ref = _ref_same_conv(x, filt)
    err = float(jnp.max(jnp.abs(y - ref)))
    assert err < 2e-2, err

    print("KERNEL_OK")
</pallas_src>

<mosaic_0001>
module attributes {stable_mosaic.version = 11 : i64} {
  func.func @_fir_band_kernel(%arg0: i32, %arg1: memref<3x256x256xf32, #tpu.memory_space<vmem>>, %arg2: memref<2x8x256xf32, #tpu.memory_space<vmem>>, %arg3: memref<2x128xf32, #tpu.memory_space<vmem>>, %arg4: memref<2x128xf32, #tpu.memory_space<vmem>>, %arg5: memref<2x8x256xf32, #tpu.memory_space<vmem>>) attributes {dimension_semantics = [#tpu.dimension_semantics<parallel>], iteration_bounds = array<i64: 2>, scalar_prefetch = 0 : i64, scratch_operands = 0 : i64, tpu.core_type = #tpu.core_type<tc>, window_params = [{pipeline_mode = #tpu.pipeline_mode<synchronous>, transform_indices = @transform_0, window_bounds = array<i64: 3, 256, 256>}, {transform_indices = @transform_1, window_bounds = array<i64: 2, 8, 256>}, {transform_indices = @transform_2, window_bounds = array<i64: 2, 128>}, {transform_indices = @transform_3, window_bounds = array<i64: 2, 128>}, {transform_indices = @transform_4, window_bounds = array<i64: 2, 8, 256>}]} {
    %c0 = arith.constant 0 : index
    %c0_0 = arith.constant 0 : index
    %c0_1 = arith.constant 0 : index
    %0 = vector.load %arg2[%c0, %c0_0, %c0_1] : memref<2x8x256xf32, #tpu.memory_space<vmem>>, vector<2x8x256xf32>
    %c0_2 = arith.constant 0 : index
    %c0_3 = arith.constant 0 : index
    %1 = vector.load %arg3[%c0_2, %c0_3] : memref<2x128xf32, #tpu.memory_space<vmem>>, vector<2x128xf32>
    %c0_i32 = arith.constant 0 : i32
    %2 = arith.cmpi sgt, %arg0, %c0_i32 : i32
    %3 = arith.extui %2 : i1 to i32
    %4 = arith.sitofp %3 : i32 to f32
    %5 = vector.broadcast %4 : f32 to vector<2x128xf32>
    %6 = arith.mulf %1, %5 : vector<2x128xf32>
    %c0_4 = arith.constant 0 : index
    %c0_5 = arith.constant 0 : index
    %7 = vector.load %arg4[%c0_4, %c0_5] : memref<2x128xf32, #tpu.memory_space<vmem>>, vector<2x128xf32>
    %c1_i32 = arith.constant 1 : i32
    %8 = arith.cmpi slt, %arg0, %c1_i32 : i32
    %9 = arith.extui %8 : i1 to i32
    %10 = arith.sitofp %9 : i32 to f32
    %11 = vector.broadcast %10 : f32 to vector<2x128xf32>
    %12 = arith.mulf %7, %11 : vector<2x128xf32>
    %cst = arith.constant 0.000000e+00 : f32
    %13 = vector.broadcast %cst : f32 to vector<2x1x128xf32>
    %14 = vector.shape_cast %6 : vector<2x128xf32> to vector<2x1x128xf32>
    %15 = tpu.concatenate %13, %14 in 2 : vector<2x1x128xf32>, vector<2x1x128xf32> -> vector<2x1x256xf32>
    %16 = vector.shape_cast %12 : vector<2x128xf32> to vector<2x1x128xf32>
    %17 = tpu.concatenate %16, %13 in 2 : vector<2x1x128xf32>, vector<2x1x128xf32> -> vector<2x1x256xf32>
    %18 = vector.extract_strided_slice %0 {offsets = [0, 0, 0], sizes = [2, 7, 256], strides = [1, 1, 1]} : vector<2x8x256xf32> to vector<2x7x256xf32>
    %19 = tpu.concatenate %15, %18 in 1 : vector<2x1x256xf32>, vector<2x7x256xf32> -> vector<2x8x256xf32>
    %20 = vector.extract_strided_slice %0 {offsets = [0, 1, 0], sizes = [2, 7, 256], strides = [1, 1, 1]} : vector<2x8x256xf32> to vector<2x7x256xf32>
    %21 = tpu.concatenate %20, %17 in 1 : vector<2x7x256xf32>, vector<2x1x256xf32> -> vector<2x8x256xf32>
    %22 = vector.shape_cast %0 : vector<2x8x256xf32> to vector<16x256xf32>
    %23 = vector.shape_cast %19 : vector<2x8x256xf32> to vector<16x256xf32>
    %24 = vector.shape_cast %21 : vector<2x8x256xf32> to vector<16x256xf32>
    %c0_6 = arith.constant 0 : index
    %c0_7 = arith.constant 0 : index
    %c0_8 = arith.constant 0 : index
    %25 = vector.load %arg1[%c0_6, %c0_7, %c0_8] : memref<3x256x256xf32, #tpu.memory_space<vmem>>, vector<1x256x256xf32>
    %26 = vector.shape_cast %25 : vector<1x256x256xf32> to vector<256x256xf32>
    %cst_9 = arith.constant dense<0.000000e+00> : vector<16x256xf32>
    %27 = tpu.matmul %23, %26, %cst_9 {dimension_numbers = #tpu.dot_dimension_numbers<[1], [0], [0], [1], [0, 0, 1, 1], [], []>} : vector<16x256xf32>, vector<256x256xf32>, vector<16x256xf32> -> vector<16x256xf32>
    %c1 = arith.constant 1 : index
    %c0_10 = arith.constant 0 : index
    %c0_11 = arith.constant 0 : index
    %28 = vector.load %arg1[%c1, %c0_10, %c0_11] : memref<3x256x256xf32, #tpu.memory_space<vmem>>, vector<1x256x256xf32>
    %29 = vector.shape_cast %28 : vector<1x256x256xf32> to vector<256x256xf32>
    %cst_12 = arith.constant dense<0.000000e+00> : vector<16x256xf32>
    %30 = tpu.matmul %22, %29, %cst_12 {dimension_numbers = #tpu.dot_dimension_numbers<[1], [0], [0], [1], [0, 0, 1, 1], [], []>} : vector<16x256xf32>, vector<256x256xf32>, vector<16x256xf32> -> vector<16x256xf32>
    %31 = arith.addf %27, %30 : vector<16x256xf32>
    %c2 = arith.constant 2 : index
    %c0_13 = arith.constant 0 : index
    %c0_14 = arith.constant 0 : index
    %32 = vector.load %arg1[%c2, %c0_13, %c0_14] : memref<3x256x256xf32, #tpu.memory_space<vmem>>, vector<1x256x256xf32>
    %33 = vector.shape_cast %32 : vector<1x256x256xf32> to vector<256x256xf32>
    %cst_15 = arith.constant dense<0.000000e+00> : vector<16x256xf32>
    %34 = tpu.matmul %24, %33, %cst_15 {dimension_numbers = #tpu.dot_dimension_numbers<[1], [0], [0], [1], [0, 0, 1, 1], [], []>} : vector<16x256xf32>, vector<256x256xf32>, vector<16x256xf32> -> vector<16x256xf32>
    %35 = arith.addf %31, %34 : vector<16x256xf32>
    %36 = vector.shape_cast %35 : vector<16x256xf32> to vector<2x8x256xf32>
    %c0_16 = arith.constant 0 : index
    %c0_17 = arith.constant 0 : index
    %c0_18 = arith.constant 0 : index
    %37 = vector.load %arg5[%c0_16, %c0_17, %c0_18] : memref<2x8x256xf32, #tpu.memory_space<vmem>>, vector<2x8x256xf32>
    tpu.vector_store %arg5[%c0_16, %c0_17, %c0_18], %36 {strides = array<i32>} : memref<2x8x256xf32, #tpu.memory_space<vmem>>, vector<2x8x256xf32>,
    return
  }
  func.func @transform_0(%arg0: i32) -> (i32, i32, i32) {
    %c0_i32 = arith.constant 0 : i32
    %c0_i32_0 = arith.constant 0 : i32
    %c0_i32_1 = arith.constant 0 : i32
    %c0_i32_2 = arith.constant 0 : i32
    return %c0_i32, %c0_i32_0, %c0_i32_1 : i32, i32, i32
  }
  func.func @transform_1(%arg0: i32) -> (i32, i32, i32) {
    %c0_i32 = arith.constant 0 : i32
    %c0_i32_0 = arith.constant 0 : i32
    %c0_i32_1 = arith.constant 0 : i32
    return %c0_i32, %arg0, %c0_i32_0 : i32, i32, i32
  }
  func.func @transform_2(%arg0: i32) -> (i32, i32) {
    %c16_i32 = arith.constant 16 : i32
    %0 = arith.muli %arg0, %c16_i32 : i32
    %c1_i32 = arith.constant 1 : i32
    %1 = arith.subi %0, %c1_i32 : i32
    %c0_i32 = arith.constant 0 : i32
    %2 = arith.maxsi %1, %c0_i32 : i32
    %c0_i32_0 = arith.constant 0 : i32
    %c0_i32_1 = arith.constant 0 : i32
    return %c0_i32_0, %2 : i32, i32
  }
  func.func @transform_3(%arg0: i32) -> (i32, i32) {
    %c1_i32 = arith.constant 1 : i32
    %0 = arith.addi %arg0, %c1_i32 : i32
    %c16_i32 = arith.constant 16 : i32
    %1 = arith.muli %0, %c16_i32 : i32
    %c31_i32 = arith.constant 31 : i32
    %2 = arith.minsi %1, %c31_i32 : i32
    %c0_i32 = arith.constant 0 : i32
    %c0_i32_0 = arith.constant 0 : i32
    return %c0_i32, %2 : i32, i32
  }
  func.func @transform_4(%arg0: i32) -> (i32, i32, i32) {
    %c0_i32 = arith.constant 0 : i32
    %c0_i32_0 = arith.constant 0 : i32
    %c0_i32_1 = arith.constant 0 : i32
    return %c0_i32, %arg0, %c0_i32_0 : i32, i32, i32
  }
}

</mosaic_0001>

<llo_original>
// kernel: tpu_custom_call.1
$region0: #{tpu_custom_call.1}
  #allocation0 [shape = 'u32[]', space=smem, size = 0x4, offset = 0x4, fixed_abs, tag = 'smem constant byte address 0x4 - core index']
  #allocation1 [shape = 'u32[144,128]{1,0:T(1,128)}', space=vmem, size = 0x12000, scoped, tag = 'internal scratch']
  %s0 = inlined_call_operand.hbm [shape: f32[3,256,256], index: 0, kind: input, shape index: {}]
  %s1 = inlined_call_operand.hbm [shape: f32[2,16,256], index: 1, kind: input, shape index: {}]
  %s2 = inlined_call_operand.hbm [shape: f32[2,4096], index: 2, kind: input, shape index: {}]
  %s3 = inlined_call_operand.hbm [shape: f32[2,4096], index: 3, kind: input, shape index: {}]
  %s4 = inlined_call_operand.hbm [shape: f32[2,16,256], index: 4, kind: output, shape index: {}]
  %s5 = sld [smem:[#allocation0]]
  $region65: #{tpu_custom_call.1} parent=0
    _
  %s7 = ssub.s32 1, %s5
  %s8 = scalar_select 0, %s7, %s5
  $region1: #{tpu_custom_call.1} parent=0
    #allocation2 [shape = 'u8[786432]{0}', space=vmem, size = 0xc0000, scoped, tag = 'input window, operand 0, single buffered']
    #allocation3 [shape = 's32[2]{0}', space=sflag, size = 0x8, scoped, tag = 'scoped memory for tpu_custom_call.1']
    #allocation4 [shape = 's32[2]{0}', space=sflag, size = 0x8, scoped, tag = 'scoped memory for tpu_custom_call.1']
    #allocation5 [shape = 'u8[32768]{0}', space=vmem, size = 0x8000, scoped, tag = 'input window, operand 1']
    #allocation6 [shape = 's32[2]{0}', space=sflag, size = 0x8, scoped, tag = 'scoped memory for tpu_custom_call.1']
    #allocation7 [shape = 'u8[2048]{0}', space=vmem, size = 0x800, scoped, tag = 'input window, operand 2']
    #allocation8 [shape = 'u8[2048]{0}', space=vmem, size = 0x800, scoped, tag = 'input window, operand 3']
    #allocation9 [shape = 's32[2]{0}', space=sflag, size = 0x8, scoped, tag = 'scoped memory for tpu_custom_call.1']
    #allocation10 [shape = 'u8[32768]{0}', space=vmem, size = 0x8000, scoped, tag = 'output window, operand 0']
    %9 = vsyncpa [#allocation3], 0
    %10 = vsyncpa [#allocation6], 0
    %s11 = scalar_lea.sflag [#allocation6], 1
    %12 = vsyncpa %s11, 0
    %13 = vsyncpa [#allocation9], 0
    %s14 = scalar_lea.sflag [#allocation9], 1
    %15 = vsyncpa %s14, 0
    %16 = vsyncpa [#allocation4], 0
    %s17 = scalar_lea.sflag [#allocation4], 1
    %18 = vsyncpa %s17, 0
    loop: start=0, step=1, limit=4
    $region2: #{tpu_custom_call.1} parent=1 // loop_pre_header
      _
    $region3: #{tpu_custom_call.1} parent=1 // loop_header
      %s20 = sphi 0, %s24
      %p21 = scmp.ge.s32.totalorder %s20, 4
      %s28 = sphi 0, %s28
      %s30 = sphi 0, %s28
      %s31 = sphi 0, %s30
      %s45 = sphi 0, %s31
      %s51 = sphi 0, %s53
      %s54 = sphi 0, %s51
      %s55 = sphi 0, %s54
      %s71 = sphi 0, %s55
      %s85 = sphi 0, %s87
      %s88 = sphi 0, %s85
      %s89 = sphi 0, %s88
      %s105 = sphi 0, %s89
      %s119 = sphi 0, %s121
      %s122 = sphi 0, %s119
      %s123 = sphi 0, %s122
      %s139 = sphi 0, %s123
      %s145 = sphi 0, %s147
      %s148 = sphi 0, %s145
      %s149 = sphi 0, %s148
      %s165 = sphi 0, %s149
    $region4: #{tpu_custom_call.1} parent=1 // loop_header_branch
      %23 = sbr.rel (%p21) target = $region8
    $region5: #{tpu_custom_call.1} parent=1 // loop_body
      %s25 = ssub.s32 %s20, 1
      %s26 = ssub.s32 %s20, 2
      %s27 = sadd.s32 %s20, 1
      %s29 = sadd.s32 %s28, 1
      %p32 = scmp.eq.s32.totalorder %s20, 1
      %p33 = scmp.ne.s32.totalorder %s28, %s30
      %p34 = scmp.eq.s32.totalorder %s20, 0
      %p35 = por %p33, %p34
      %p36 = scmp.ne.s32.totalorder %s28, %s30
      %p37 = scmp.eq.s32.totalorder %s25, 1
      %p38 = por %p36, %p37
      %p39 = scmp.ne.s32.totalorder %s30, %s31
      %p40 = scmp.eq.s32.totalorder %s25, 0
      %p41 = por %p39, %p40
      %p42 = scmp.ne.s32.totalorder %s30, %s31
      %p43 = scmp.eq.s32.totalorder %s26, 1
      %p44 = por %p42, %p43
      %p46 = scmp.ne.s32.totalorder %s31, %s45
      %p47 = scmp.eq.s32.totalorder %s26, 0
      %p48 = por %p46, %p47
      %s49 = ssub.s32 %s20, %s27
      %p50 = scmp.eq.s32.totalorder %s49, 0
      %s52 = sadd.s32 %s51, 1
      %s53 = scalar_select %p50, %s51, %s52
      %p56 = pneg %p50
      %p57 = scmp.eq.s32.totalorder %s20, 1
      %p58 = por %p56, %p57
      %p59 = scmp.ne.s32.totalorder %s51, %s54
      %p60 = scmp.eq.s32.totalorder %s20, 0
      %p61 = por %p59, %p60
      %p62 = scmp.ne.s32.totalorder %s51, %s54
      %p63 = scmp.eq.s32.totalorder %s25, 1
      %p64 = por %p62, %p63
      %p65 = scmp.ne.s32.totalorder %s54, %s55
      %p66 = scmp.eq.s32.totalorder %s25, 0
      %p67 = por %p65, %p66
      %p68 = scmp.ne.s32.totalorder %s54, %s55
      %p69 = scmp.eq.s32.totalorder %s26, 1
      %p70 = por %p68, %p69
      %p72 = scmp.ne.s32.totalorder %s55, %s71
      %p73 = scmp.eq.s32.totalorder %s26, 0
      %p74 = por %p72, %p73
      %s75 = smul.u32 %s20, 16
      %s76 = ssub.s32 %s75, 1
      %p77 = scmp.gt.s32.totalorder %s76, 0
      %s78 = scalar_select %p77, %s76, 0
      %s79 = smul.u32 %s27, 16
      %s80 = ssub.s32 %s79, 1
      %p81 = scmp.gt.s32.totalorder %s80, 0
      %s82 = scalar_select %p81, %s80, 0
      %s83 = ssub.s32 %s78, %s82
      %p84 = scmp.eq.s32.totalorder %s83, 0
      %s86 = sadd.s32 %s85, 1
      %s87 = scalar_select %p84, %s85, %s86
      %p90 = pneg %p84
      %p91 = scmp.eq.s32.totalorder %s20, 1
      %p92 = por %p90, %p91
      %p93 = scmp.ne.s32.totalorder %s85, %s88
      %p94 = scmp.eq.s32.totalorder %s20, 0
      %p95 = por %p93, %p94
      %p96 = scmp.ne.s32.totalorder %s85, %s88
      %p97 = scmp.eq.s32.totalorder %s25, 1
      %p98 = por %p96, %p97
      %p99 = scmp.ne.s32.totalorder %s88, %s89
      %p100 = scmp.eq.s32.totalorder %s25, 0
      %p101 = por %p99, %p100
      %p102 = scmp.ne.s32.totalorder %s88, %s89
      %p103 = scmp.eq.s32.totalorder %s26, 1
      %p104 = por %p102, %p103
      %p106 = scmp.ne.s32.totalorder %s89, %s105
      %p107 = scmp.eq.s32.totalorder %s26, 0
      %p108 = por %p106, %p107
      %s109 = sadd.s32 %s20, 1
      %s110 = smul.u32 %s109, 16
      %p111 = scmp.lt.s32.totalorder %s110, 31
      %s112 = scalar_select %p111, %s110, 31
      %s113 = sadd.s32 %s27, 1
      %s114 = smul.u32 %s113, 16
      %p115 = scmp.lt.s32.totalorder %s114, 31
      %s116 = scalar_select %p115, %s114, 31
      %s117 = ssub.s32 %s112, %s116
      %p118 = scmp.eq.s32.totalorder %s117, 0
      %s120 = sadd.s32 %s119, 1
      %s121 = scalar_select %p118, %s119, %s120
      %p124 = pneg %p118
      %p125 = scmp.eq.s32.totalorder %s20, 1
      %p126 = por %p124, %p125
      %p127 = scmp.ne.s32.totalorder %s119, %s122
      %p128 = scmp.eq.s32.totalorder %s20, 0
      %p129 = por %p127, %p128
      %p130 = scmp.ne.s32.totalorder %s119, %s122
      %p131 = scmp.eq.s32.totalorder %s25, 1
      %p132 = por %p130, %p131
      %p133 = scmp.ne.s32.totalorder %s122, %s123
      %p134 = scmp.eq.s32.totalorder %s25, 0
      %p135 = por %p133, %p134
      %p136 = scmp.ne.s32.totalorder %s122, %s123
      %p137 = scmp.eq.s32.totalorder %s26, 1
      %p138 = por %p136, %p137
      %p140 = scmp.ne.s32.totalorder %s123, %s139
      %p141 = scmp.eq.s32.totalorder %s26, 0
      %p142 = por %p140, %p141
      %s143 = ssub.s32 %s20, %s27
      %p144 = scmp.eq.s32.totalorder %s143, 0
      %s146 = sadd.s32 %s145, 1
      %s147 = scalar_select %p144, %s145, %s146
      %p150 = pneg %p144
      %p151 = scmp.eq.s32.totalorder %s20, 1
      %p152 = por %p150, %p151
      %p153 = scmp.ne.s32.totalorder %s145, %s148
      %p154 = scmp.eq.s32.totalorder %s20, 0
      %p155 = por %p153, %p154
      %p156 = scmp.ne.s32.totalorder %s145, %s148
      %p157 = scmp.eq.s32.totalorder %s25, 1
      %p158 = por %p156, %p157
      %p159 = scmp.ne.s32.totalorder %s148, %s149
      %p160 = scmp.eq.s32.totalorder %s25, 0
      %p161 = por %p159, %p160
      %p162 = scmp.ne.s32.totalorder %s148, %s149
      %p163 = scmp.eq.s32.totalorder %s26, 1
      %p164 = por %p162, %p163
      %p166 = scmp.ne.s32.totalorder %s149, %s165
      %p167 = scmp.eq.s32.totalorder %s26, 0
      %p168 = por %p166, %p167
      %p169 = scmp.le.s32.totalorder 1, %s20
      %p170 = scmp.lt.s32.totalorder %s20, 3
      %p171 = pnand %p169, %p170
      %p172 = pneg %p171
      // Predicated region
      $region9: #{tpu_custom_call.1} parent=5 // pred_check
        _
      $region10: #{tpu_custom_call.1} parent=5 // pred_check_branch
        %174 = sbr.rel (%p171) target = $region12
      $region11: #{tpu_custom_call.1} parent=5 // pred_region
        %s175 = ssub.s32 %s20, 1
        // Predicated region
        $region13: #{tpu_custom_call.1} parent=11 // pred_check
          %p176 = pneg %p41
        $region14: #{tpu_custom_call.1} parent=11 // pred_check_branch
          %178 = sbr.rel (%p176) target = $region16
        $region15: #{tpu_custom_call.1} parent=11 // pred_region
          %s180 = ssub.s32 24576, 24576
          %181 = vsyncadd [#allocation3], %s180
          %s182 = sshll.u32 [#allocation2], 4
          %s183 = int_to_ptr.vmem [resolvable:$true] %s182
          %188 = dma.hbm_to_vmem [thread:$0]  %s0, 24576, %s183, [#allocation3], 256, 256, 16
        $region16: #{tpu_custom_call.1} parent=11 // pred_fallthru
          _
      $region12: #{tpu_custom_call.1} parent=5 // pred_fallthru
        _
      %p189 = scmp.lt.s32.totalorder %s20, 2
      // Predicated region
      $region17: #{tpu_custom_call.1} parent=5 // pred_check
        %p190 = pneg %p189
      $region18: #{tpu_custom_call.1} parent=5 // pred_check_branch
        %192 = sbr.rel (%p190) target = $region20
      $region19: #{tpu_custom_call.1} parent=5 // pred_region
        // Predicated region
        $region21: #{tpu_custom_call.1} parent=19 // pred_check
          %p193 = pneg %p61
        $region22: #{tpu_custom_call.1} parent=19 // pred_check_branch
          %195 = sbr.rel (%p193) target = $region24
        $region23: #{tpu_custom_call.1} parent=19 // pred_region
          %s196 = sand.u32 %s20, 1
          %s197 = scalar_lea.sflag [#allocation6], %s196
          %s198 = sand.u32 %s51, 1
          %s199 = smul.addr %s198, 32
          %s200 = scalar_lea.vmem [#allocation5], %s199
          %s202 = ssub.s32 512, 512
          %203 = vsyncadd %s197, %s202
          %s204 = smul.addr %s20, 2
          %s205 = smul.addr %s204, 128
          %s206 = scalar_lea.hbm %s1, %s205
          %s207 = sshll.u32 %s200, 4
          %s208 = int_to_ptr.vmem [resolvable:$true] %s207
          %213 = dma.hbm_to_vmem [thread:$0]  %s206, 512, %s208, %s197, 512, 256, 16
        $region24: #{tpu_custom_call.1} parent=19 // pred_fallthru
          _
        // Predicated region
        $region25: #{tpu_custom_call.1} parent=19 // pred_check
          %p214 = pneg %p95
        $region26: #{tpu_custom_call.1} parent=19 // pred_check_branch
          %216 = sbr.rel (%p214) target = $region28
        $region27: #{tpu_custom_call.1} parent=19 // pred_region
          %s217 = sand.u32 %s20, 1
          %s218 = scalar_lea.sflag [#allocation6], %s217
          %s219 = sand.u32 %s85, 1
          %s220 = smul.addr %s219, 2
          %s221 = scalar_lea.vmem [#allocation7], %s220
          %s222 = smul.u32 %s20, 16
          %s223 = ssub.s32 %s222, 1
          %p224 = scmp.gt.s32.totalorder %s223, 0
          %s225 = scalar_select %p224, %s223, 0
          %s227 = ssub.s32 32, 32
          %228 = vsyncadd %s218, %s227
          %s229 = smul.addr %s225, 32
          %s230 = scalar_lea.hbm %s2, %s229
          %s232 = sshll.u32 %s221, 4
          %s233 = int_to_ptr.vmem [resolvable:$true] %s232
          %235 = dma.hbm_to_vmem [thread:$0]  %s230, 32, %s233, %s218
        $region28: #{tpu_custom_call.1} parent=19 // pred_fallthru
          _
        // Predicated region
        $region29: #{tpu_custom_call.1} parent=19 // pred_check
          %p236 = pneg %p129
        $region30: #{tpu_custom_call.1} parent=19 // pred_check_branch
          %238 = sbr.rel (%p236) target = $region32
        $region31: #{tpu_custom_call.1} parent=19 // pred_region
          %s239 = sand.u32 %s119, 1
          %s240 = scalar_lea.sflag [#allocation9], %s239
          %s241 = sand.u32 %s119, 1
          %s242 = smul.addr %s241, 2
          %s243 = scalar_lea.vmem [#allocation8], %s242
          %s244 = sadd.s32 %s20, 1
          %s245 = smul.u32 %s244, 16
          %p246 = scmp.lt.s32.totalorder %s245, 31
          %s247 = scalar_select %p246, %s245, 31
          %s249 = ssub.s32 32, 32
          %250 = vsyncadd %s240, %s249
          %s251 = smul.addr %s247, 32
          %s252 = scalar_lea.hbm %s3, %s251
          %s254 = sshll.u32 %s243, 4
          %s255 = int_to_ptr.vmem [resolvable:$true] %s254
          %257 = dma.hbm_to_vmem [thread:$0]  %s252, 32, %s255, %s240
        $region32: #{tpu_custom_call.1} parent=19 // pred_fallthru
          _
      $region20: #{tpu_custom_call.1} parent=5 // pred_fallthru
        _
      %p258 = scmp.le.s32.totalorder 1, %s20
      %p259 = scmp.lt.s32.totalorder %s20, 3
      %p260 = pnand %p258, %p259
      %p261 = pneg %p260
      // Predicated region
      $region33: #{tpu_custom_call.1} parent=5 // pred_check
        _
      $region34: #{tpu_custom_call.1} parent=5 // pred_check_branch
        %263 = sbr.rel (%p260) target = $region36
      $region35: #{tpu_custom_call.1} parent=5 // pred_region
        %s264 = ssub.s32 %s20, 1
        // Predicated region
        $region37: #{tpu_custom_call.1} parent=35 // pred_check
          %p265 = pneg %p41
        $region38: #{tpu_custom_call.1} parent=35 // pred_check_branch
          %267 = sbr.rel (%p265) target = $region40
        $region39: #{tpu_custom_call.1} parent=35 // pred_region
          %268 = dma.done [#allocation3], 24576
        $region40: #{tpu_custom_call.1} parent=35 // pred_fallthru
          _
        %s269 = sand.u32 %s25, 1
        %s270 = scalar_lea.sflag [#allocation6], %s269
        %s271 = sand.u32 %s54, 1
        %s272 = smul.addr %s271, 32
        %s273 = scalar_lea.vmem [#allocation5], %s272
        // Predicated region
        $region41: #{tpu_custom_call.1} parent=35 // pred_check
          %p274 = pneg %p67
        $region42: #{tpu_custom_call.1} parent=35 // pred_check_branch
          %276 = sbr.rel (%p274) target = $region44
        $region43: #{tpu_custom_call.1} parent=35 // pred_region
          %277 = dma.done %s270, 512
        $region44: #{tpu_custom_call.1} parent=35 // pred_fallthru
          _
        %s278 = sand.u32 %s25, 1
        %s279 = scalar_lea.sflag [#allocation6], %s278
        %s280 = sand.u32 %s88, 1
        %s281 = smul.addr %s280, 2
        %s282 = scalar_lea.vmem [#allocation7], %s281
        // Predicated region
        $region45: #{tpu_custom_call.1} parent=35 // pred_check
          %p283 = pneg %p101
        $region46: #{tpu_custom_call.1} parent=35 // pred_check_branch
          %285 = sbr.rel (%p283) target = $region48
        $region47: #{tpu_custom_call.1} parent=35 // pred_region
          %286 = dma.done %s279, 32
        $region48: #{tpu_custom_call.1} parent=35 // pred_fallthru
          _
        %s287 = sand.u32 %s122, 1
        %s288 = scalar_lea.sflag [#allocation9], %s287
        %s289 = sand.u32 %s122, 1
        %s290 = smul.addr %s289, 2
        %s291 = scalar_lea.vmem [#allocation8], %s290
        // Predicated region
        $region49: #{tpu_custom_call.1} parent=35 // pred_check
          %p292 = pneg %p135
        $region50: #{tpu_custom_call.1} parent=35 // pred_check_branch
          %294 = sbr.rel (%p292) target = $region52
        $region51: #{tpu_custom_call.1} parent=35 // pred_region
          %295 = dma.done %s288, 32
        $region52: #{tpu_custom_call.1} parent=35 // pred_fallthru
          _
        %p296 = pneg %p41
        %p297 = pneg %p38
        %s298 = sand.u32 %s25, 1
        %s299 = scalar_lea.sflag [#allocation6], %s298
        %s300 = sand.u32 %s54, 1
        %s301 = smul.addr %s300, 32
        %s302 = scalar_lea.vmem [#allocation5], %s301
        %p303 = pneg %p67
        %p304 = pneg %p64
        %s305 = sand.u32 %s25, 1
        %s306 = scalar_lea.sflag [#allocation6], %s305
        %s307 = sand.u32 %s88, 1
        %s308 = smul.addr %s307, 2
        %s309 = scalar_lea.vmem [#allocation7], %s308
        %p310 = pneg %p101
        %p311 = pneg %p98
        %s312 = sand.u32 %s122, 1
        %s313 = scalar_lea.sflag [#allocation9], %s312
        %s314 = sand.u32 %s122, 1
        %s315 = smul.addr %s314, 2
        %s316 = scalar_lea.vmem [#allocation8], %s315
        %p317 = pneg %p135
        %p318 = pneg %p132
        %p319 = pneg %p161
        %p320 = pneg %p158
        %s321 = sand.u32 %s148, 1
        %s322 = scalar_lea.sflag [#allocation4], %s321
        %s323 = sand.u32 %s148, 1
        %s324 = smul.addr %s323, 32
        %s325 = scalar_lea.vmem [#allocation10], %s324
        %s326 = smul.u32 %s25, 16
        %s327 = ssub.s32 %s326, 1
        %p328 = scmp.gt.s32.totalorder %s327, 0
        %s329 = scalar_select %p328, %s327, 0
        %s330 = sadd.s32 %s25, 1
        %s331 = smul.u32 %s330, 16
        %p332 = scmp.lt.s32.totalorder %s331, 31
        %s333 = scalar_select %p332, %s331, 31
        %v334 = vld [vmem:[%s273] sm:$0xff]
        %v335 = vld [vmem:[%s273 + $0x8] sm:$0xff]
        %v336 = vld [vmem:[%s273 + $0x10] sm:$0xff]
        %v337 = vld [vmem:[%s273 + $0x18] sm:$0xff]
        %v338 = vld [vmem:[%s282] sm:$0x3]
        %p339 = scmp.gt.s32.totalorder %s25, 0
        %s340 = scalar_select %p339, 1, 0
        %s341 = scvt.s32.f32 %s340
        %v342 = vstv %s341
        %v343 = vmul.f32 %v338, %v342
        %v344 = vld [vmem:[%s291] sm:$0x3]
        %p345 = scmp.lt.s32.totalorder %s25, 1
        %s346 = scalar_select %p345, 1, 0
        %s347 = scvt.s32.f32 %s346
        %v348 = vstv %s347
        %v349 = vmul.f32 %v344, %v348
        %v352 = vunpack.c.l.s4 1966171168
        %v353 = vunpack.c.0.s8 %v352
        %v354 = vlaneseq
        %v355 = vshrl.u32 %v354, 7
        %v356 = vsub.s32 %v353, %v355
        %v357 = vrot.slane %v343, %v356
        %v358 = vcombine.high %v357, %v357
        %v360 = vunpack.c.l.s4 1966171168
        %v361 = vunpack.c.0.s8 %v360
        %v362 = vlaneseq
        %v363 = vshrl.u32 %v362, 7
        %v364 = vsub.s32 %v361, %v363
        %v365 = vrot.slane %v357, %v364
        %v367 = vunpack.c.l.s4 1966171168
        %v368 = vunpack.c.0.s8 %v367
        %v369 = vlaneseq
        %v370 = vshrl.u32 %v369, 7
        %v371 = vsub.s32 %v368, %v370
        %v372 = vrot.slane %v358, %v371
        %v377 = vunpack.c.l.s4 1966171168
        %v378 = vunpack.c.0.s8 %v377
        %v379 = vlaneseq
        %v380 = vshrl.u32 %v379, 7
        %v381 = vsub.s32 %v378, %v380
        %v382 = vrot.slane %v349, %v381
        %v383 = vcombine.high %v382, %v382
        %v385 = vunpack.c.l.s4 1966171168
        %v386 = vunpack.c.0.s8 %v385
        %v387 = vlaneseq
        %v388 = vshrl.u32 %v387, 7
        %v389 = vsub.s32 %v386, %v388
        %v390 = vrot.slane %v382, %v389
        %v392 = vunpack.c.l.s4 1966171168
        %v393 = vunpack.c.0.s8 %v392
        %v394 = vlaneseq
        %v395 = vshrl.u32 %v394, 7
        %v396 = vsub.s32 %v393, %v395
        %v397 = vrot.slane %v383, %v396
        %v402 = vrot.slane %v334, 7
        %v403 = vrot.slane %v335, 7
        %v404 = vrot.slane %v336, 7
        %v405 = vrot.slane %v337, 7
        %vm410 = vcmask 1040384
        %v411 = vsel %vm410, 0.0, %v402
        %v412 = vsel %vm410, %v365, %v403
        %v413 = vsel %vm410, 0.0, %v404
        %v414 = vsel %vm410, %v372, %v405
        %v415 = vrot.slane %v334, 1
        %v416 = vrot.slane %v335, 1
        %v417 = vrot.slane %v336, 1
        %v418 = vrot.slane %v337, 1
        %v424 = vrot.slane %v390, 1
        %v425 = vrot.slane 0.0, 1
        %v426 = vrot.slane %v397, 1
        %vm430 = vcmask 1046528
        %v431 = vsel %vm430, %v415, %v424
        %v432 = vsel %vm430, %v416, %v425
        %v433 = vsel %vm430, %v417, %v426
        %v434 = vsel %vm430, %v418, %v425
        %v435 = vld [vmem:[#allocation2] sm:$0xff]
        %v436 = vld [vmem:[#allocation2 + $0x8] sm:$0xff]
        %v437 = vld [vmem:[#allocation2 + $0x10] sm:$0xff]
        %v438 = vld [vmem:[#allocation2 + $0x18] sm:$0xff]
        %v439 = vld [vmem:[#allocation2 + $0x20] sm:$0xff]
        %v440 = vld [vmem:[#allocation2 + $0x28] sm:$0xff]
        %v441 = vld [vmem:[#allocation2 + $0x30] sm:$0xff]
        %v442 = vld [vmem:[#allocation2 + $0x38] sm:$0xff]
        %v443 = vld [vmem:[#allocation2 + $0x40] sm:$0xff]
        %v444 = vld [vmem:[#allocation2 + $0x48] sm:$0xff]
        %v445 = vld [vmem:[#allocation2 + $0x50] sm:$0xff]
        %v446 = vld [vmem:[#allocation2 + $0x58] sm:$0xff]
        %v447 = vld [vmem:[#allocation2 + $0x60] sm:$0xff]
        %v448 = vld [vmem:[#allocation2 + $0x68] sm:$0xff]
        %v449 = vld [vmem:[#allocation2 + $0x70] sm:$0xff]
        %v450 = vld [vmem:[#allocation2 + $0x78] sm:$0xff]
        %v451 = vld [vmem:[#allocation2 + $0x80] sm:$0xff]
        %v452 = vld [vmem:[#allocation2 + $0x88] sm:$0xff]
        %v453 = vld [vmem:[#allocation2 + $0x90] sm:$0xff]
        %v454 = vld [vmem:[#allocation2 + $0x98] sm:$0xff]
        %v455 = vld [vmem:[#allocation2 + $0xa0] sm:$0xff]
        %v456 = vld [vmem:[#allocation2 + $0xa8] sm:$0xff]
        %v457 = vld [vmem:[#allocation2 + $0xb0] sm:$0xff]
        %v458 = vld [vmem:[#allocation2 + $0xb8] sm:$0xff]
        %v459 = vld [vmem:[#allocation2 + $0xc0] sm:$0xff]
        %v460 = vld [vmem:[#allocation2 + $0xc8] sm:$0xff]
        %v461 = vld [vmem:[#allocation2 + $0xd0] sm:$0xff]
        %v462 = vld [vmem:[#allocation2 + $0xd8] sm:$0xff]
        %v463 = vld [vmem:[#allocation2 + $0xe0] sm:$0xff]
        %v464 = vld [vmem:[#allocation2 + $0xe8] sm:$0xff]
        %v465 = vld [vmem:[#allocation2 + $0xf0] sm:$0xff]
        %v466 = vld [vmem:[#allocation2 + $0xf8] sm:$0xff]
        %v467 = vld [vmem:[#allocation2 + $0x100] sm:$0xff]
        %v468 = vld [vmem:[#allocation2 + $0x108] sm:$0xff]
        %v469 = vld [vmem:[#allocation2 + $0x110] sm:$0xff]
        %v470 = vld [vmem:[#allocation2 + $0x118] sm:$0xff]
        %v471 = vld [vmem:[#allocation2 + $0x120] sm:$0xff]
        %v472 = vld [vmem:[#allocation2 + $0x128] sm:$0xff]
        %v473 = vld [vmem:[#allocation2 + $0x130] sm:$0xff]
        %v474 = vld [vmem:[#allocation2 + $0x138] sm:$0xff]
        %v475 = vld [vmem:[#allocation2 + $0x140] sm:$0xff]
        %v476 = vld [vmem:[#allocation2 + $0x148] sm:$0xff]
        %v477 = vld [vmem:[#allocation2 + $0x150] sm:$0xff]
        %v478 = vld [vmem:[#allocation2 + $0x158] sm:$0xff]
        %v479 = vld [vmem:[#allocation2 + $0x160] sm:$0xff]
        %v480 = vld [vmem:[#allocation2 + $0x168] sm:$0xff]
        %v481 = vld [vmem:[#allocation2 + $0x170] sm:$0xff]
        %v482 = vld [vmem:[#allocation2 + $0x178] sm:$0xff]
        %v483 = vld [vmem:[#allocation2 + $0x180] sm:$0xff]
        %v484 = vld [vmem:[#allocation2 + $0x188] sm:$0xff]
        %v485 = vld [vmem:[#allocation2 + $0x190] sm:$0xff]
        %v486 = vld [vmem:[#allocation2 + $0x198] sm:$0xff]
        %v487 = vld [vmem:[#allocation2 + $0x1a0] sm:$0xff]
        %v488 = vld [vmem:[#allocation2 + $0x1a8] sm:$0xff]
        %v489 = vld [vmem:[#allocation2 + $0x1b0] sm:$0xff]
        %v490 = vld [vmem:[#allocation2 + $0x1b8] sm:$0xff]
        %v491 = vld [vmem:[#allocation2 + $0x1c0] sm:$0xff]
        %v492 = vld [vmem:[#allocation2 + $0x1c8] sm:$0xff]
        %v493 = vld [vmem:[#allocation2 + $0x1d0] sm:$0xff]
        %v494 = vld [vmem:[#allocation2 + $0x1d8] sm:$0xff]
        %v495 = vld [vmem:[#allocation2 + $0x1e0] sm:$0xff]
        %v496 = vld [vmem:[#allocation2 + $0x1e8] sm:$0xff]
        %v497 = vld [vmem:[#allocation2 + $0x1f0] sm:$0xff]
        %v498 = vld [vmem:[#allocation2 + $0x1f8] sm:$0xff]
        %s499 = scalar_lea.vmem [#allocation2], 512
        %v500 = vld [vmem:[%s499] sm:$0xff]
        %v501 = vld [vmem:[%s499 + $0x8] sm:$0xff]
        %v502 = vld [vmem:[%s499 + $0x10] sm:$0xff]
        %v503 = vld [vmem:[%s499 + $0x18] sm:$0xff]
        %v504 = vld [vmem:[%s499 + $0x20] sm:$0xff]
        %v505 = vld [vmem:[%s499 + $0x28] sm:$0xff]
        %v506 = vld [vmem:[%s499 + $0x30] sm:$0xff]
        %v507 = vld [vmem:[%s499 + $0x38] sm:$0xff]
        %v508 = vld [vmem:[%s499 + $0x40] sm:$0xff]
        %v509 = vld [vmem:[%s499 + $0x48] sm:$0xff]
        %v510 = vld [vmem:[%s499 + $0x50] sm:$0xff]
        %v511 = vld [vmem:[%s499 + $0x58] sm:$0xff]
        %v512 = vld [vmem:[%s499 + $0x60] sm:$0xff]
        %v513 = vld [vmem:[%s499 + $0x68] sm:$0xff]
        %v514 = vld [vmem:[%s499 + $0x70] sm:$0xff]
        %v515 = vld [vmem:[%s499 + $0x78] sm:$0xff]
        %v516 = vld [vmem:[%s499 + $0x80] sm:$0xff]
        %v517 = vld [vmem:[%s499 + $0x88] sm:$0xff]
        %v518 = vld [vmem:[%s499 + $0x90] sm:$0xff]
        %v519 = vld [vmem:[%s499 + $0x98] sm:$0xff]
        %v520 = vld [vmem:[%s499 + $0xa0] sm:$0xff]
        %v521 = vld [vmem:[%s499 + $0xa8] sm:$0xff]
        %v522 = vld [vmem:[%s499 + $0xb0] sm:$0xff]
        %v523 = vld [vmem:[%s499 + $0xb8] sm:$0xff]
        %v524 = vld [vmem:[%s499 + $0xc0] sm:$0xff]
        %v525 = vld [vmem:[%s499 + $0xc8] sm:$0xff]
        %v526 = vld [vmem:[%s499 + $0xd0] sm:$0xff]
        %v527 = vld [vmem:[%s499 + $0xd8] sm:$0xff]
        %v528 = vld [vmem:[%s499 + $0xe0] sm:$0xff]
        %v529 = vld [vmem:[%s499 + $0xe8] sm:$0xff]
        %v530 = vld [vmem:[%s499 + $0xf0] sm:$0xff]
        %v531 = vld [vmem:[%s499 + $0xf8] sm:$0xff]
        %v532 = vld [vmem:[%s499 + $0x100] sm:$0xff]
        %v533 = vld [vmem:[%s499 + $0x108] sm:$0xff]
        %v534 = vld [vmem:[%s499 + $0x110] sm:$0xff]
        %v535 = vld [vmem:[%s499 + $0x118] sm:$0xff]
        %v536 = vld [vmem:[%s499 + $0x120] sm:$0xff]
        %v537 = vld [vmem:[%s499 + $0x128] sm:$0xff]
        %v538 = vld [vmem:[%s499 + $0x130] sm:$0xff]
        %v539 = vld [vmem:[%s499 + $0x138] sm:$0xff]
        %v540 = vld [vmem:[%s499 + $0x140] sm:$0xff]
        %v541 = vld [vmem:[%s499 + $0x148] sm:$0xff]
        %v542 = vld [vmem:[%s499 + $0x150] sm:$0xff]
        %v543 = vld [vmem:[%s499 + $0x158] sm:$0xff]
        %v544 = vld [vmem:[%s499 + $0x160] sm:$0xff]
        %v545 = vld [vmem:[%s499 + $0x168] sm:$0xff]
        %v546 = vld [vmem:[%s499 + $0x170] sm:$0xff]
        %v547 = vld [vmem:[%s499 + $0x178] sm:$0xff]
        %v548 = vld [vmem:[%s499 + $0x180] sm:$0xff]
        %v549 = vld [vmem:[%s499 + $0x188] sm:$0xff]
        %v550 = vld [vmem:[%s499 + $0x190] sm:$0xff]
        %v551 = vld [vmem:[%s499 + $0x198] sm:$0xff]
        %v552 = vld [vmem:[%s499 + $0x1a0] sm:$0xff]
        %v553 = vld [vmem:[%s499 + $0x1a8] sm:$0xff]
        %v554 = vld [vmem:[%s499 + $0x1b0] sm:$0xff]
        %v555 = vld [vmem:[%s499 + $0x1b8] sm:$0xff]
        %v556 = vld [vmem:[%s499 + $0x1c0] sm:$0xff]
        %v557 = vld [vmem:[%s499 + $0x1c8] sm:$0xff]
        %v558 = vld [vmem:[%s499 + $0x1d0] sm:$0xff]
        %v559 = vld [vmem:[%s499 + $0x1d8] sm:$0xff]
        %v560 = vld [vmem:[%s499 + $0x1e0] sm:$0xff]
        %v561 = vld [vmem:[%s499 + $0x1e8] sm:$0xff]
        %v562 = vld [vmem:[%s499 + $0x1f0] sm:$0xff]
        %v563 = vld [vmem:[%s499 + $0x1f8] sm:$0xff]
        %564 = vmatprep.subr.mxu0 %v531
        %565 = vmatpush1.msra.mxu0 %v530
        %566 = vmatprep.subr.mxu0 %v529
        %567 = vmatpush1.msra.mxu0 %v528
        %568 = vmatprep.subr.mxu0 %v527
        %569 = vmatpush1.msra.mxu0 %v526
        %570 = vmatprep.subr.mxu0 %v525
        %571 = vmatpush1.msra.mxu0 %v524
        %572 = vmatprep.subr.mxu0 %v523
        %573 = vmatpush1.msra.mxu0 %v522
        %574 = vmatprep.subr.mxu0 %v521
        %575 = vmatpush1.msra.mxu0 %v520
        %576 = vmatprep.subr.mxu0 %v519
        %577 = vmatpush1.msra.mxu0 %v518
        %578 = vmatprep.subr.mxu0 %v517
        %579 = vmatpush1.msra.mxu0 %v516
        %580 = vmatprep.subr.mxu0 %v515
        %581 = vmatpush1.msra.mxu0 %v514
        %582 = vmatprep.subr.mxu0 %v513
        %583 = vmatpush1.msra.mxu0 %v512
        %584 = vmatprep.subr.mxu0 %v511
        %585 = vmatpush1.msra.mxu0 %v510
        %586 = vmatprep.subr.mxu0 %v509
        %587 = vmatpush1.msra.mxu0 %v508
        %588 = vmatprep.subr.mxu0 %v507
        %589 = vmatpush1.msra.mxu0 %v506
        %590 = vmatprep.subr.mxu0 %v505
        %591 = vmatpush1.msra.mxu0 %v504
        %592 = vmatprep.subr.mxu0 %v503
        %593 = vmatpush1.msra.mxu0 %v502
        %594 = vmatprep.subr.mxu0 %v501
        %595 = vmatpush1.msra.mxu0 %v500
        %596 = vmatprep.subr.mxu0 %v563
        %597 = vmatpush2.msra.mxu0 %v562
        %598 = vmatprep.subr.mxu0 %v561
        %599 = vmatpush2.msra.mxu0 %v560
        %600 = vmatprep.subr.mxu0 %v559
        %601 = vmatpush2.msra.mxu0 %v558
        %602 = vmatprep.subr.mxu0 %v557
        %603 = vmatpush2.msra.mxu0 %v556
        %604 = vmatprep.subr.mxu0 %v555
        %605 = vmatpush2.msra.mxu0 %v554
        %606 = vmatprep.subr.mxu0 %v553
        %607 = vmatpush2.msra.mxu0 %v552
        %608 = vmatprep.subr.mxu0 %v551
        %609 = vmatpush2.msra.mxu0 %v550
        %610 = vmatprep.subr.mxu0 %v549
        %611 = vmatpush2.msra.mxu0 %v548
        %612 = vmatprep.subr.mxu0 %v547
        %613 = vmatpush2.msra.mxu0 %v546
        %614 = vmatprep.subr.mxu0 %v545
        %615 = vmatpush2.msra.mxu0 %v544
        %616 = vmatprep.subr.mxu0 %v543
        %617 = vmatpush2.msra.mxu0 %v542
        %618 = vmatprep.subr.mxu0 %v541
        %619 = vmatpush2.msra.mxu0 %v540
        %620 = vmatprep.subr.mxu0 %v539
        %621 = vmatpush2.msra.mxu0 %v538
        %622 = vmatprep.subr.mxu0 %v537
        %623 = vmatpush2.msra.mxu0 %v536
        %624 = vmatprep.subr.mxu0 %v535
        %625 = vmatpush2.msra.mxu0 %v534
        %626 = vmatprep.subr.mxu0 %v533
        %627 = vmatpush2.msra.mxu0 %v532
        %628 = vmatprep.mubr.f32.mxu0 %v335
        %629 = vmatmul.mubr.f32.gmra.mxu0 %v334
        %v630 = vpop.f32.mrf.mxu0
        %v631 = vadd.f32 0.0, %v630
        %v632 = vpop.f32.mrf.mxu0
        %v633 = vadd.f32 0.0, %v632
        %634 = vmatprep.mubr.f32.mxu0 %v337
        %635 = vmatmul.mubr.f32.gmra.mxu0 %v336
        %v636 = vpop.f32.mrf.mxu0
        %v637 = vadd.f32 0.0, %v636
        %v638 = vpop.f32.mrf.mxu0
        %v639 = vadd.f32 0.0, %v638
        %640 = vdwg.mxu0
        %641 = vmatprep.subr.mxu0 %v466
        %642 = vmatpush1.msra.mxu0 %v465
        %643 = vmatprep.subr.mxu0 %v464
        %644 = vmatpush1.msra.mxu0 %v463
        %645 = vmatprep.subr.mxu0 %v462
        %646 = vmatpush1.msra.mxu0 %v461
        %647 = vmatprep.subr.mxu0 %v460
        %648 = vmatpush1.msra.mxu0 %v459
        %649 = vmatprep.subr.mxu0 %v458
        %650 = vmatpush1.msra.mxu0 %v457
        %651 = vmatprep.subr.mxu0 %v456
        %652 = vmatpush1.msra.mxu0 %v455
        %653 = vmatprep.subr.mxu0 %v454
        %654 = vmatpush1.msra.mxu0 %v453
        %655 = vmatprep.subr.mxu0 %v452
        %656 = vmatpush1.msra.mxu0 %v451
        %657 = vmatprep.subr.mxu0 %v450
        %658 = vmatpush1.msra.mxu0 %v449
        %659 = vmatprep.subr.mxu0 %v448
        %660 = vmatpush1.msra.mxu0 %v447
        %661 = vmatprep.subr.mxu0 %v446
        %662 = vmatpush1.msra.mxu0 %v445
        %663 = vmatprep.subr.mxu0 %v444
        %664 = vmatpush1.msra.mxu0 %v443
        %665 = vmatprep.subr.mxu0 %v442
        %666 = vmatpush1.msra.mxu0 %v441
        %667 = vmatprep.subr.mxu0 %v440
        %668 = vmatpush1.msra.mxu0 %v439
        %669 = vmatprep.subr.mxu0 %v438
        %670 = vmatpush1.msra.mxu0 %v437
        %671 = vmatprep.subr.mxu0 %v436
        %672 = vmatpush1.msra.mxu0 %v435
        %673 = vmatprep.subr.mxu0 %v498
        %674 = vmatpush2.msra.mxu0 %v497
        %675 = vmatprep.subr.mxu0 %v496
        %676 = vmatpush2.msra.mxu0 %v495
        %677 = vmatprep.subr.mxu0 %v494
        %678 = vmatpush2.msra.mxu0 %v493
        %679 = vmatprep.subr.mxu0 %v492
        %680 = vmatpush2.msra.mxu0 %v491
        %681 = vmatprep.subr.mxu0 %v490
        %682 = vmatpush2.msra.mxu0 %v489
        %683 = vmatprep.subr.mxu0 %v488
        %684 = vmatpush2.msra.mxu0 %v487
        %685 = vmatprep.subr.mxu0 %v486
        %686 = vmatpush2.msra.mxu0 %v485
        %687 = vmatprep.subr.mxu0 %v484
        %688 = vmatpush2.msra.mxu0 %v483
        %689 = vmatprep.subr.mxu0 %v482
        %690 = vmatpush2.msra.mxu0 %v481
        %691 = vmatprep.subr.mxu0 %v480
        %692 = vmatpush2.msra.mxu0 %v479
        %693 = vmatprep.subr.mxu0 %v478
        %694 = vmatpush2.msra.mxu0 %v477
        %695 = vmatprep.subr.mxu0 %v476
        %696 = vmatpush2.msra.mxu0 %v475
        %697 = vmatprep.subr.mxu0 %v474
        %698 = vmatpush2.msra.mxu0 %v473
        %699 = vmatprep.subr.mxu0 %v472
        %700 = vmatpush2.msra.mxu0 %v471
        %701 = vmatprep.subr.mxu0 %v470
        %702 = vmatpush2.msra.mxu0 %v469
        %703 = vmatprep.subr.mxu0 %v468
        %704 = vmatpush2.msra.mxu0 %v467
        %705 = vmatprep.mubr.f32.mxu0 %v412
        %706 = vmatmul.mubr.f32.gmra.mxu0 %v411
        %v707 = vpop.f32.mrf.mxu0
        %v708 = vadd.f32 %v631, %v707
        %v709 = vpop.f32.mrf.mxu0
        %v710 = vadd.f32 %v633, %v709
        %711 = vmatprep.mubr.f32.mxu0 %v414
        %712 = vmatmul.mubr.f32.gmra.mxu0 %v413
        %v713 = vpop.f32.mrf.mxu0
        %v714 = vadd.f32 %v637, %v713
        %v715 = vpop.f32.mrf.mxu0
        %v716 = vadd.f32 %v639, %v715
        %717 = vdwg.mxu0
        %s718 = scalar_lea.vmem [#allocation2], 1024
        %v719 = vld [vmem:[%s718] sm:$0xff]
        %v720 = vld [vmem:[%s718 + $0x8] sm:$0xff]
        %v721 = vld [vmem:[%s718 + $0x10] sm:$0xff]
        %v722 = vld [vmem:[%s718 + $0x18] sm:$0xff]
        %v723 = vld [vmem:[%s718 + $0x20] sm:$0xff]
        %v724 = vld [vmem:[%s718 + $0x28] sm:$0xff]
        %v725 = vld [vmem:[%s718 + $0x30] sm:$0xff]
        %v726 = vld [vmem:[%s718 + $0x38] sm:$0xff]
        %v727 = vld [vmem:[%s718 + $0x40] sm:$0xff]
        %v728 = vld [vmem:[%s718 + $0x48] sm:$0xff]
        %v729 = vld [vmem:[%s718 + $0x50] sm:$0xff]
        %v730 = vld [vmem:[%s718 + $0x58] sm:$0xff]
        %v731 = vld [vmem:[%s718 + $0x60] sm:$0xff]
        %v732 = vld [vmem:[%s718 + $0x68] sm:$0xff]
        %v733 = vld [vmem:[%s718 + $0x70] sm:$0xff]
        %v734 = vld [vmem:[%s718 + $0x78] sm:$0xff]
        %v735 = vld [vmem:[%s718 + $0x80] sm:$0xff]
        %v736 = vld [vmem:[%s718 + $0x88] sm:$0xff]
        %v737 = vld [vmem:[%s718 + $0x90] sm:$0xff]
        %v738 = vld [vmem:[%s718 + $0x98] sm:$0xff]
        %v739 = vld [vmem:[%s718 + $0xa0] sm:$0xff]
        %v740 = vld [vmem:[%s718 + $0xa8] sm:$0xff]
        %v741 = vld [vmem:[%s718 + $0xb0] sm:$0xff]
        %v742 = vld [vmem:[%s718 + $0xb8] sm:$0xff]
        %v743 = vld [vmem:[%s718 + $0xc0] sm:$0xff]
        %v744 = vld [vmem:[%s718 + $0xc8] sm:$0xff]
        %v745 = vld [vmem:[%s718 + $0xd0] sm:$0xff]
        %v746 = vld [vmem:[%s718 + $0xd8] sm:$0xff]
        %v747 = vld [vmem:[%s718 + $0xe0] sm:$0xff]
        %v748 = vld [vmem:[%s718 + $0xe8] sm:$0xff]
        %v749 = vld [vmem:[%s718 + $0xf0] sm:$0xff]
        %v750 = vld [vmem:[%s718 + $0xf8] sm:$0xff]
        %v751 = vld [vmem:[%s718 + $0x100] sm:$0xff]
        %v752 = vld [vmem:[%s718 + $0x108] sm:$0xff]
        %v753 = vld [vmem:[%s718 + $0x110] sm:$0xff]
        %v754 = vld [vmem:[%s718 + $0x118] sm:$0xff]
        %v755 = vld [vmem:[%s718 + $0x120] sm:$0xff]
        %v756 = vld [vmem:[%s718 + $0x128] sm:$0xff]
        %v757 = vld [vmem:[%s718 + $0x130] sm:$0xff]
        %v758 = vld [vmem:[%s718 + $0x138] sm:$0xff]
        %v759 = vld [vmem:[%s718 + $0x140] sm:$0xff]
        %v760 = vld [vmem:[%s718 + $0x148] sm:$0xff]
        %v761 = vld [vmem:[%s718 + $0x150] sm:$0xff]
        %v762 = vld [vmem:[%s718 + $0x158] sm:$0xff]
        %v763 = vld [vmem:[%s718 + $0x160] sm:$0xff]
        %v764 = vld [vmem:[%s718 + $0x168] sm:$0xff]
        %v765 = vld [vmem:[%s718 + $0x170] sm:$0xff]
        %v766 = vld [vmem:[%s718 + $0x178] sm:$0xff]
        %v767 = vld [vmem:[%s718 + $0x180] sm:$0xff]
        %v768 = vld [vmem:[%s718 + $0x188] sm:$0xff]
        %v769 = vld [vmem:[%s718 + $0x190] sm:$0xff]
        %v770 = vld [vmem:[%s718 + $0x198] sm:$0xff]
        %v771 = vld [vmem:[%s718 + $0x1a0] sm:$0xff]
        %v772 = vld [vmem:[%s718 + $0x1a8] sm:$0xff]
        %v773 = vld [vmem:[%s718 + $0x1b0] sm:$0xff]
        %v774 = vld [vmem:[%s718 + $0x1b8] sm:$0xff]
        %v775 = vld [vmem:[%s718 + $0x1c0] sm:$0xff]
        %v776 = vld [vmem:[%s718 + $0x1c8] sm:$0xff]
        %v777 = vld [vmem:[%s718 + $0x1d0] sm:$0xff]
        %v778 = vld [vmem:[%s718 + $0x1d8] sm:$0xff]
        %v779 = vld [vmem:[%s718 + $0x1e0] sm:$0xff]
        %v780 = vld [vmem:[%s718 + $0x1e8] sm:$0xff]
        %v781 = vld [vmem:[%s718 + $0x1f0] sm:$0xff]
        %v782 = vld [vmem:[%s718 + $0x1f8] sm:$0xff]
        %783 = vmatprep.subr.mxu0 %v750
        %784 = vmatpush1.msra.mxu0 %v749
        %785 = vmatprep.subr.mxu0 %v748
        %786 = vmatpush1.msra.mxu0 %v747
        %787 = vmatprep.subr.mxu0 %v746
        %788 = vmatpush1.msra.mxu0 %v745
        %789 = vmatprep.subr.mxu0 %v744
        %790 = vmatpush1.msra.mxu0 %v743
        %791 = vmatprep.subr.mxu0 %v742
        %792 = vmatpush1.msra.mxu0 %v741
        %793 = vmatprep.subr.mxu0 %v740
        %794 = vmatpush1.msra.mxu0 %v739
        %795 = vmatprep.subr.mxu0 %v738
        %796 = vmatpush1.msra.mxu0 %v737
        %797 = vmatprep.subr.mxu0 %v736
        %798 = vmatpush1.msra.mxu0 %v735
        %799 = vmatprep.subr.mxu0 %v734
        %800 = vmatpush1.msra.mxu0 %v733
        %801 = vmatprep.subr.mxu0 %v732
        %802 = vmatpush1.msra.mxu0 %v731
        %803 = vmatprep.subr.mxu0 %v730
        %804 = vmatpush1.msra.mxu0 %v729
        %805 = vmatprep.subr.mxu0 %v728
        %806 = vmatpush1.msra.mxu0 %v727
        %807 = vmatprep.subr.mxu0 %v726
        %808 = vmatpush1.msra.mxu0 %v725
        %809 = vmatprep.subr.mxu0 %v724
        %810 = vmatpush1.msra.mxu0 %v723
        %811 = vmatprep.subr.mxu0 %v722
        %812 = vmatpush1.msra.mxu0 %v721
        %813 = vmatprep.subr.mxu0 %v720
        %814 = vmatpush1.msra.mxu0 %v719
        %815 = vmatprep.subr.mxu0 %v782
        %816 = vmatpush2.msra.mxu0 %v781
        %817 = vmatprep.subr.mxu0 %v780
        %818 = vmatpush2.msra.mxu0 %v779
        %819 = vmatprep.subr.mxu0 %v778
        %820 = vmatpush2.msra.mxu0 %v777
        %821 = vmatprep.subr.mxu0 %v776
        %822 = vmatpush2.msra.mxu0 %v775
        %823 = vmatprep.subr.mxu0 %v774
        %824 = vmatpush2.msra.mxu0 %v773
        %825 = vmatprep.subr.mxu0 %v772
        %826 = vmatpush2.msra.mxu0 %v771
        %827 = vmatprep.subr.mxu0 %v770
        %828 = vmatpush2.msra.mxu0 %v769
        %829 = vmatprep.subr.mxu0 %v768
        %830 = vmatpush2.msra.mxu0 %v767
        %831 = vmatprep.subr.mxu0 %v766
        %832 = vmatpush2.msra.mxu0 %v765
        %833 = vmatprep.subr.mxu0 %v764
        %834 = vmatpush2.msra.mxu0 %v763
        %835 = vmatprep.subr.mxu0 %v762
        %836 = vmatpush2.msra.mxu0 %v761
        %837 = vmatprep.subr.mxu0 %v760
        %838 = vmatpush2.msra.mxu0 %v759
        %839 = vmatprep.subr.mxu0 %v758
        %840 = vmatpush2.msra.mxu0 %v757
        %841 = vmatprep.subr.mxu0 %v756
        %842 = vmatpush2.msra.mxu0 %v755
        %843 = vmatprep.subr.mxu0 %v754
        %844 = vmatpush2.msra.mxu0 %v753
        %845 = vmatprep.subr.mxu0 %v752
        %846 = vmatpush2.msra.mxu0 %v751
        %847 = vmatprep.mubr.f32.mxu0 %v432
        %848 = vmatmul.mubr.f32.gmra.mxu0 %v431
        %v849 = vpop.f32.mrf.mxu0
        %v850 = vadd.f32 0.0, %v849
        %v851 = vpop.f32.mrf.mxu0
        %v852 = vadd.f32 0.0, %v851
        %853 = vmatprep.mubr.f32.mxu0 %v434
        %854 = vmatmul.mubr.f32.gmra.mxu0 %v433
        %v855 = vpop.f32.mrf.mxu0
        %v856 = vadd.f32 0.0, %v855
        %v857 = vpop.f32.mrf.mxu0
        %v858 = vadd.f32 0.0, %v857
        %859 = vdwg.mxu0
        %v860 = vadd.f32 %v708, %v850
        %v861 = vadd.f32 %v710, %v852
        %v862 = vadd.f32 %v714, %v856
        %v863 = vadd.f32 %v716, %v858
        %864 = vst [vmem:[%s325] sm:$0xff] %v860
        %865 = vst [vmem:[%s325 + $0x8] sm:$0xff] %v861
        %866 = vst [vmem:[%s325 + $0x10] sm:$0xff] %v862
        %867 = vst [vmem:[%s325 + $0x18] sm:$0xff] %v863
        %s868 = sand.u32 %s148, 1
        %s869 = scalar_lea.sflag [#allocation4], %s868
        %s870 = sand.u32 %s148, 1
        %s871 = smul.addr %s870, 32
        %s872 = scalar_lea.vmem [#allocation10], %s871
        // Predicated region
        $region53: #{tpu_custom_call.1} parent=35 // pred_check
          %p873 = pneg %p158
        $region54: #{tpu_custom_call.1} parent=35 // pred_check_branch
          %875 = sbr.rel (%p873) target = $region56
        $region55: #{tpu_custom_call.1} parent=35 // pred_region
          %s877 = ssub.s32 512, 512
          %878 = vsyncadd %s869, %s877
          %s879 = smul.addr %s25, 2
          %s880 = smul.addr %s879, 128
          %s881 = scalar_lea.hbm %s4, %s880
          %s882 = sshll.u32 %s872, 4
          %s883 = int_to_ptr.vmem [resolvable:$true] %s882
          %888 = dma.vmem_to_hbm [thread:$0]  %s883, 512, %s881, %s869, 256, 512, 16
        $region56: #{tpu_custom_call.1} parent=35 // pred_fallthru
          _
      $region36: #{tpu_custom_call.1} parent=5 // pred_fallthru
        _
      %p889 = scmp.le.s32.totalorder 2, %s20
      // Predicated region
      $region57: #{tpu_custom_call.1} parent=5 // pred_check
        %p890 = pneg %p889
      $region58: #{tpu_custom_call.1} parent=5 // pred_check_branch
        %892 = sbr.rel (%p890) target = $region60
      $region59: #{tpu_custom_call.1} parent=5 // pred_region
        %s893 = ssub.s32 %s20, 2
        // Predicated region
        $region61: #{tpu_custom_call.1} parent=59 // pred_check
          %p894 = pneg %p164
        $region62: #{tpu_custom_call.1} parent=59 // pred_check_branch
          %896 = sbr.rel (%p894) target = $region64
        $region63: #{tpu_custom_call.1} parent=59 // pred_region
          %s897 = sand.u32 %s149, 1
          %s898 = scalar_lea.sflag [#allocation4], %s897
          %s899 = sand.u32 %s149, 1
          %s900 = smul.addr %s899, 32
          %s901 = scalar_lea.vmem [#allocation10], %s900
          %902 = dma.done %s898, 512
        $region64: #{tpu_custom_call.1} parent=59 // pred_fallthru
          _
      $region60: #{tpu_custom_call.1} parent=5 // pred_fallthru
        _
    $region6: #{tpu_custom_call.1} parent=1 // loop_footer
      %s24 = sadd.s32 1, %s20
    $region7: #{tpu_custom_call.1} parent=1 // loop_footer_branch
      %19 = sbr.rel target = $region3
    $region8: #{tpu_custom_call.1} parent=1 // loop_exit
      _
    %903 = vsyncpa [#allocation3], 1
    %s904 = scalar_lea.sflag [#allocation3], 1
    %905 = vsyncpa %s904, 1
    %906 = vsyncpa [#allocation6], 1
    %s907 = scalar_lea.sflag [#allocation6], 1
    %908 = vsyncpa %s907, 1
    %909 = vsyncpa [#allocation9], 1
    %s910 = scalar_lea.sflag [#allocation9], 1
    %911 = vsyncpa %s910, 1
    %912 = vsyncpa [#allocation4], 1
    %s913 = scalar_lea.sflag [#allocation4], 1
    %914 = vsyncpa %s913, 1

</llo_original>
